<compile_context>
chip_gen: v6e
topology: v6e:2x2x1
jax: 0.10.0
libtpu: 0.0.40
codegen_flags: <defaults>
</compile_context>

<pallas_src>
import jax
import jax.numpy as jnp
from jax.experimental import pallas as pl
from jax.experimental.pallas import tpu as pltpu

# Sobel taps in cross-correlation form (matches F.conv3d in the PyTorch
# module: gx <- kernel_x, gy <- kernel_x.T, zero padding = 1, unnormalized).
_KX = ((-1.0, 0.0, 1.0),
       (-2.0, 0.0, 2.0),
       (-1.0, 0.0, 1.0))
_KY = ((-1.0, -2.0, -1.0),
       (0.0, 0.0, 0.0),
       (1.0, 2.0, 1.0))


def _accumulate(acc, k, term):
    """acc + k * term, avoiding multiplies for k = +/-1."""
    if k == 1.0:
        t = term
    elif k == -1.0:
        t = -term
    else:
        t = k * term
    return t if acc is None else acc + t


def _make_wmse_kernel(T, H, W, BC, n_i, ragged):
    def kernel(x_ref, y_ref, out_ref, yp_ref):
        # x_ref, y_ref: (T, H, W) tiles; out_ref: resident (1, H, W) partial
        # accumulator; yp_ref: (T, H+2, W+2) zero-halo scratch.
        i = pl.program_id(1)

        @pl.when(i == 0)
        def _init():
            # Zero the halo scratch once per parallel chunk (the border stays
            # zero afterwards; only the interior is rewritten each step) and
            # zero the resident output accumulator block.
            yp_ref[...] = jnp.zeros_like(yp_ref)
            out_ref[...] = jnp.zeros_like(out_ref)

        y = y_ref[...]                               # (T, H, W)
        yp_ref[:, 1:H + 1, 1:W + 1] = y              # interior of padded scratch

        # Statically unrolled 3x3 cross-correlation via shifted windows.
        gx = None
        gy = None
        for r in range(3):
            for c in range(3):
                kx, ky = _KX[r][c], _KY[r][c]
                if kx == 0.0 and ky == 0.0:
                    continue
                win = yp_ref[:, r:r + H, c:c + W]    # shifted (T, H, W) window
                if kx != 0.0:
                    gx = _accumulate(gx, kx, win)
                if ky != 0.0:
                    gy = _accumulate(gy, ky, win)

        mag = jnp.sqrt(gx * gx + gy * gy)            # |sobel(Y)|
        diff = x_ref[...] - y
        contrib = mag * (diff * diff)

        if ragged:
            # The last tile along the flattened (B*C) axis reads past the end;
            # zero those slices' contributions (garbage never propagates
            # across slices because the stencil is per-slice).
            base = (pl.program_id(0) * n_i + i) * T
            t_ids = jax.lax.broadcasted_iota(jnp.int32, (T, H, W), 0)
            contrib = jnp.where(base + t_ids < BC, contrib, 0.0)

        # Pure VPU: fold the T slices and accumulate into the resident block.
        out_ref[...] += jnp.sum(contrib, axis=0, keepdims=True)

    return kernel


def _round_up(a, b):
    return -(-a // b) * b


def wmse(X, Y, *, vmem_budget_bytes=16 * 1024 * 1024):
    """WMSE.forward: sum(sobel(Y) * (X - Y)**2) for NCHW inputs."""
    B, C, H, W = X.shape
    BC = B * C
    xf = X.reshape(BC, H, W).astype(jnp.float32)
    yf = Y.reshape(BC, H, W).astype(jnp.float32)

    # --- VMEM-aware choice of how many (b, c) slices to process per step ---
    # Per-slice f32 footprints, padded to the (8, 128) VMEM tile layout.
    slice_bytes = _round_up(H, 8) * _round_up(W, 128) * 4
    pad_bytes = _round_up(H + 2, 8) * _round_up(W + 2, 128) * 4
    # 2 streams x 2 pipeline buffers + halo scratch + elementwise temporaries.
    per_slice = 10 * slice_bytes + pad_bytes
    t_max = max(1, vmem_budget_bytes // per_slice)
    T = int(min(t_max, max(1, BC // 2)))    # keep >=2 tiles when possible
    n_tiles = -(-BC // T)                   # cdiv
    P = 2 if n_tiles % 2 == 0 else 1        # parallel axis for 2-TC chips (v7x)
    n_i = n_tiles // P
    ragged = (BC % T) != 0
    # TODO(synk): add H-tiling with a 1-row halo for slices too large for VMEM at T=1.

    kernel = _make_wmse_kernel(T, H, W, BC, n_i, ragged)

    partial = pl.pallas_call(
        kernel,
        out_shape=jax.ShapeDtypeStruct((P, H, W), jnp.float32),
        grid_spec=pltpu.PrefetchScalarGridSpec(
            num_scalar_prefetch=0,
            grid=(P, n_i),
            in_specs=[
                pl.BlockSpec((T, H, W), lambda p, i: (p * n_i + i, 0, 0)),
                pl.BlockSpec((T, H, W), lambda p, i: (p * n_i + i, 0, 0)),
            ],
            out_specs=pl.BlockSpec((1, H, W), lambda p, i: (p, 0, 0)),
            scratch_shapes=[pltpu.VMEM((T, H + 2, W + 2), jnp.float32)],
        ),
        compiler_params=pltpu.CompilerParams(
            dimension_semantics=("parallel", "arbitrary"),
            vmem_limit_bytes=32 * 1024 * 1024,
        ),
    )(xf, yf)
    return jnp.sum(partial)


def _wmse_reference(X, Y):
    """Pure-JAX reference of the PyTorch module (zero-padded Sobel)."""
    H, W = X.shape[2], X.shape[3]
    Xf = X.astype(jnp.float32)
    Yf = Y.astype(jnp.float32)
    yp = jnp.pad(Yf, ((0, 0), (0, 0), (1, 1), (1, 1)))
    gx = jnp.zeros(X.shape, jnp.float32)
    gy = jnp.zeros(X.shape, jnp.float32)
    for i in range(3):
        for j in range(3):
            win = yp[:, :, i:i + H, j:j + W]
            gx = gx + _KX[i][j] * win
            gy = gy + _KY[i][j] * win
    mag = jnp.sqrt(gx * gx + gy * gy)
    return jnp.sum(mag * (Xf - Yf) ** 2)


if __name__ == "__main__":
    key = jax.random.PRNGKey(0)

    # Spec-sized case: B*C = 8 -> T = 4, 2 tiles, parallel axis P = 2.
    k1, k2 = jax.random.split(key)
    X = jax.random.normal(k1, (2, 4, 16, 16), dtype=jnp.float32)
    Y = jax.random.normal(k2, (2, 4, 16, 16), dtype=jnp.float32)
    loss = jax.block_until_ready(wmse(X, Y))
    ref = jax.block_until_ready(_wmse_reference(X, Y))
    assert jnp.isfinite(loss)
    assert jnp.allclose(loss, ref, rtol=1e-4, atol=1e-4), (loss, ref)

    # Ragged case: B*C = 5 is not divisible by the tile size (mask path).
    k3, k4 = jax.random.split(k1)
    X2 = jax.random.normal(k3, (1, 5, 16, 16), dtype=jnp.float32)
    Y2 = jax.random.normal(k4, (1, 5, 16, 16), dtype=jnp.float32)
    loss2 = jax.block_until_ready(wmse(X2, Y2))
    ref2 = jax.block_until_ready(_wmse_reference(X2, Y2))
    assert jnp.isfinite(loss2)
    assert jnp.allclose(loss2, ref2, rtol=1e-4, atol=1e-4), (loss2, ref2)

    print("KERNEL_OK")
</pallas_src>

<mosaic_0001>
module attributes {stable_mosaic.version = 11 : i64} {
  func.func @kernel(%arg0: i32, %arg1: i32, %arg2: memref<4x16x16xf32, #tpu.memory_space<vmem>>, %arg3: memref<4x16x16xf32, #tpu.memory_space<vmem>>, %arg4: memref<1x16x16xf32, #tpu.memory_space<vmem>>, %arg5: memref<4x18x18xf32, #tpu.memory_space<vmem>>) attributes {dimension_semantics = [#tpu.dimension_semantics<parallel>, #tpu.dimension_semantics<arbitrary>], iteration_bounds = array<i64: 2, 1>, scalar_prefetch = 0 : i64, scratch_operands = 1 : i64, tpu.core_type = #tpu.core_type<tc>, window_params = [{transform_indices = @transform_0, window_bounds = array<i64: 4, 16, 16>}, {transform_indices = @transform_1, window_bounds = array<i64: 4, 16, 16>}, {transform_indices = @transform_2, window_bounds = array<i64: 1, 16, 16>}]} {
    %c0_i32 = arith.constant 0 : i32
    %0 = arith.cmpi eq, %arg1, %c0_i32 : i32
    %1 = arith.extui %0 : i1 to i32
    %c0_i32_0 = arith.constant 0 : i32
    %2 = arith.cmpi ne, %1, %c0_i32_0 : i32
    scf.if %2 {
      %cst_45 = arith.constant 0.000000e+00 : f32
      %52 = vector.broadcast %cst_45 : f32 to vector<4x18x18xf32>
      %c0_46 = arith.constant 0 : index
      %c0_47 = arith.constant 0 : index
      %c0_48 = arith.constant 0 : index
      %53 = vector.load %arg5[%c0_46, %c0_47, %c0_48] : memref<4x18x18xf32, #tpu.memory_space<vmem>>, vector<4x18x18xf32>
      tpu.vector_store %arg5[%c0_46, %c0_47, %c0_48], %52 {strides = array<i32>} : memref<4x18x18xf32, #tpu.memory_space<vmem>>, vector<4x18x18xf32>,
      %cst_49 = arith.constant 0.000000e+00 : f32
      %54 = vector.broadcast %cst_49 : f32 to vector<1x16x16xf32>
      %c0_50 = arith.constant 0 : index
      %c0_51 = arith.constant 0 : index
      %c0_52 = arith.constant 0 : index
      %55 = vector.load %arg4[%c0_50, %c0_51, %c0_52] : memref<1x16x16xf32, #tpu.memory_space<vmem>>, vector<1x16x16xf32>
      tpu.vector_store %arg4[%c0_50, %c0_51, %c0_52], %54 {strides = array<i32>} : memref<1x16x16xf32, #tpu.memory_space<vmem>>, vector<1x16x16xf32>,
    } else {
    }
    %c0 = arith.constant 0 : index
    %c0_1 = arith.constant 0 : index
    %c0_2 = arith.constant 0 : index
    %3 = vector.load %arg3[%c0, %c0_1, %c0_2] : memref<4x16x16xf32, #tpu.memory_space<vmem>>, vector<4x16x16xf32>
    %c0_3 = arith.constant 0 : index
    %c1 = arith.constant 1 : index
    %c1_4 = arith.constant 1 : index
    %4 = vector.load %arg5[%c0_3, %c1, %c1_4] : memref<4x18x18xf32, #tpu.memory_space<vmem>>, vector<4x16x16xf32>
    tpu.vector_store %arg5[%c0_3, %c1, %c1_4], %3 {strides = array<i32>} : memref<4x18x18xf32, #tpu.memory_space<vmem>>, vector<4x16x16xf32>,
    %c0_5 = arith.constant 0 : index
    %c0_6 = arith.constant 0 : index
    %c0_7 = arith.constant 0 : index
    %5 = vector.load %arg5[%c0_5, %c0_6, %c0_7] : memref<4x18x18xf32, #tpu.memory_space<vmem>>, vector<4x16x16xf32>
    %cst = arith.constant 0.000000e+00 : f32
    %6 = vector.broadcast %cst : f32 to vector<4x16x16xf32>
    %7 = arith.subf %6, %5 : vector<4x16x16xf32>
    %cst_8 = arith.constant 0.000000e+00 : f32
    %8 = vector.broadcast %cst_8 : f32 to vector<4x16x16xf32>
    %9 = arith.subf %8, %5 : vector<4x16x16xf32>
    %c0_9 = arith.constant 0 : index
    %c0_10 = arith.constant 0 : index
    %c1_11 = arith.constant 1 : index
    %10 = vector.load %arg5[%c0_9, %c0_10, %c1_11] : memref<4x18x18xf32, #tpu.memory_space<vmem>>, vector<4x16x16xf32>
    %cst_12 = arith.constant -2.000000e+00 : f32
    %11 = vector.broadcast %cst_12 : f32 to vector<4x16x16xf32>
    %12 = arith.mulf %11, %10 : vector<4x16x16xf32>
    %13 = arith.addf %9, %12 : vector<4x16x16xf32>
    %c0_13 = arith.constant 0 : index
    %c0_14 = arith.constant 0 : index
    %c2 = arith.constant 2 : index
    %14 = vector.load %arg5[%c0_13, %c0_14, %c2] : memref<4x18x18xf32, #tpu.memory_space<vmem>>, vector<4x16x16xf32>
    %15 = arith.addf %7, %14 : vector<4x16x16xf32>
    %cst_15 = arith.constant 0.000000e+00 : f32
    %16 = vector.broadcast %cst_15 : f32 to vector<4x16x16xf32>
    %17 = arith.subf %16, %14 : vector<4x16x16xf32>
    %18 = arith.addf %13, %17 : vector<4x16x16xf32>
    %c0_16 = arith.constant 0 : index
    %c1_17 = arith.constant 1 : index
    %c0_18 = arith.constant 0 : index
    %19 = vector.load %arg5[%c0_16, %c1_17, %c0_18] : memref<4x18x18xf32, #tpu.memory_space<vmem>>, vector<4x16x16xf32>
    %cst_19 = arith.constant -2.000000e+00 : f32
    %20 = vector.broadcast %cst_19 : f32 to vector<4x16x16xf32>
    %21 = arith.mulf %20, %19 : vector<4x16x16xf32>
    %22 = arith.addf %15, %21 : vector<4x16x16xf32>
    %c0_20 = arith.constant 0 : index
    %c1_21 = arith.constant 1 : index
    %c2_22 = arith.constant 2 : index
    %23 = vector.load %arg5[%c0_20, %c1_21, %c2_22] : memref<4x18x18xf32, #tpu.memory_space<vmem>>, vector<4x16x16xf32>
    %cst_23 = arith.constant 2.000000e+00 : f32
    %24 = vector.broadcast %cst_23 : f32 to vector<4x16x16xf32>
    %25 = arith.mulf %24, %23 : vector<4x16x16xf32>
    %26 = arith.addf %22, %25 : vector<4x16x16xf32>
    %c0_24 = arith.constant 0 : index
    %c2_25 = arith.constant 2 : index
    %c0_26 = arith.constant 0 : index
    %27 = vector.load %arg5[%c0_24, %c2_25, %c0_26] : memref<4x18x18xf32, #tpu.memory_space<vmem>>, vector<4x16x16xf32>
    %cst_27 = arith.constant 0.000000e+00 : f32
    %28 = vector.broadcast %cst_27 : f32 to vector<4x16x16xf32>
    %29 = arith.subf %28, %27 : vector<4x16x16xf32>
    %30 = arith.addf %26, %29 : vector<4x16x16xf32>
    %31 = arith.addf %18, %27 : vector<4x16x16xf32>
    %c0_28 = arith.constant 0 : index
    %c2_29 = arith.constant 2 : index
    %c1_30 = arith.constant 1 : index
    %32 = vector.load %arg5[%c0_28, %c2_29, %c1_30] : memref<4x18x18xf32, #tpu.memory_space<vmem>>, vector<4x16x16xf32>
    %cst_31 = arith.constant 2.000000e+00 : f32
    %33 = vector.broadcast %cst_31 : f32 to vector<4x16x16xf32>
    %34 = arith.mulf %33, %32 : vector<4x16x16xf32>
    %35 = arith.addf %31, %34 : vector<4x16x16xf32>
    %c0_32 = arith.constant 0 : index
    %c2_33 = arith.constant 2 : index
    %c2_34 = arith.constant 2 : index
    %36 = vector.load %arg5[%c0_32, %c2_33, %c2_34] : memref<4x18x18xf32, #tpu.memory_space<vmem>>, vector<4x16x16xf32>
    %37 = arith.addf %30, %36 : vector<4x16x16xf32>
    %38 = arith.addf %35, %36 : vector<4x16x16xf32>
    %39 = arith.mulf %37, %37 : vector<4x16x16xf32>
    %40 = arith.mulf %38, %38 : vector<4x16x16xf32>
    %41 = arith.addf %39, %40 : vector<4x16x16xf32>
    %42 = math.sqrt %41 : vector<4x16x16xf32>
    %c0_35 = arith.constant 0 : index
    %c0_36 = arith.constant 0 : index
    %c0_37 = arith.constant 0 : index
    %43 = vector.load %arg2[%c0_35, %c0_36, %c0_37] : memref<4x16x16xf32, #tpu.memory_space<vmem>>, vector<4x16x16xf32>
    %44 = arith.subf %43, %3 : vector<4x16x16xf32>
    %45 = arith.mulf %44, %44 : vector<4x16x16xf32>
    %46 = arith.mulf %42, %45 : vector<4x16x16xf32>
    %c0_38 = arith.constant 0 : index
    %c0_39 = arith.constant 0 : index
    %c0_40 = arith.constant 0 : index
    %47 = vector.load %arg4[%c0_38, %c0_39, %c0_40] : memref<1x16x16xf32, #tpu.memory_space<vmem>>, vector<1x16x16xf32>
    %cst_41 = arith.constant dense<0.000000e+00> : vector<16x16xf32>
    %48 = vector.multi_reduction <add>, %46, %cst_41 [0] : vector<4x16x16xf32> to vector<16x16xf32>
    %49 = vector.shape_cast %48 : vector<16x16xf32> to vector<1x16x16xf32>
    %50 = arith.addf %47, %49 : vector<1x16x16xf32>
    %c0_42 = arith.constant 0 : index
    %c0_43 = arith.constant 0 : index
    %c0_44 = arith.constant 0 : index
    %51 = vector.load %arg4[%c0_42, %c0_43, %c0_44] : memref<1x16x16xf32, #tpu.memory_space<vmem>>, vector<1x16x16xf32>
    tpu.vector_store %arg4[%c0_42, %c0_43, %c0_44], %50 {strides = array<i32>} : memref<1x16x16xf32, #tpu.memory_space<vmem>>, vector<1x16x16xf32>,
    return
  }
  func.func @transform_0(%arg0: i32, %arg1: i32) -> (i32, i32, i32) {
    %c1_i32 = arith.constant 1 : i32
    %0 = arith.muli %arg0, %c1_i32 : i32
    %1 = arith.addi %0, %arg1 : i32
    %c0_i32 = arith.constant 0 : i32
    %c0_i32_0 = arith.constant 0 : i32
    %c0_i32_1 = arith.constant 0 : i32
    return %1, %c0_i32, %c0_i32_0 : i32, i32, i32
  }
  func.func @transform_1(%arg0: i32, %arg1: i32) -> (i32, i32, i32) {
    %c1_i32 = arith.constant 1 : i32
    %0 = arith.muli %arg0, %c1_i32 : i32
    %1 = arith.addi %0, %arg1 : i32
    %c0_i32 = arith.constant 0 : i32
    %c0_i32_0 = arith.constant 0 : i32
    %c0_i32_1 = arith.constant 0 : i32
    return %1, %c0_i32, %c0_i32_0 : i32, i32, i32
  }
  func.func @transform_2(%arg0: i32, %arg1: i32) -> (i32, i32, i32) {
    %c0_i32 = arith.constant 0 : i32
    %c0_i32_0 = arith.constant 0 : i32
    %c0_i32_1 = arith.constant 0 : i32
    return %arg0, %c0_i32, %c0_i32_0 : i32, i32, i32
  }
}

</mosaic_0001>

<llo_original>
// kernel: tpu_custom_call.1
$region0: #{tpu_custom_call.1}
  #allocation0 [shape = 'u32[]', space=smem, size = 0x4, offset = 0x4, fixed_abs, tag = 'smem constant byte address 0x4 - core index']
  #allocation1 [shape = 'u32[144,128]{1,0:T(1,128)}', space=vmem, size = 0x12000, scoped, tag = 'internal scratch']
  #allocation2 [shape = 'f32[4,18,18]{2,1,0:T(8,128)}', space=vmem, size = 0xc000, scoped, tag = 'scratch operand']
  %s0 = inlined_call_operand.hbm [shape: f32[8,16,16], index: 0, kind: input, shape index: {}]
  %s1 = inlined_call_operand.hbm [shape: f32[8,16,16], index: 1, kind: input, shape index: {}]
  %s2 = inlined_call_operand.hbm [shape: f32[2,16,16], index: 2, kind: output, shape index: {}]
  %s3 = sld [smem:[#allocation0]]
  $region53: #{tpu_custom_call.1} parent=0
    _
  %s5 = ssub.s32 1, %s3
  %s6 = scalar_select 0, %s5, %s3
  $region1: #{tpu_custom_call.1} parent=0
    #allocation3 [shape = 'u8[65536]{0}', space=vmem, size = 0x10000, scoped, tag = 'input window, operand 0']
    #allocation4 [shape = 's32[2]{0}', space=sflag, size = 0x8, scoped, tag = 'scoped memory for tpu_custom_call.1']
    #allocation5 [shape = 's32[2]{0}', space=sflag, size = 0x8, scoped, tag = 'scoped memory for tpu_custom_call.1']
    #allocation6 [shape = 'u8[65536]{0}', space=vmem, size = 0x10000, scoped, tag = 'input window, operand 1']
    #allocation7 [shape = 's32[2]{0}', space=sflag, size = 0x8, scoped, tag = 'scoped memory for tpu_custom_call.1']
    #allocation8 [shape = 'u8[16384]{0}', space=vmem, size = 0x4000, scoped, tag = 'output window, operand 0']
    %7 = vsyncpa [#allocation4], 0
    %s8 = scalar_lea.sflag [#allocation4], 1
    %9 = vsyncpa %s8, 0
    %10 = vsyncpa [#allocation7], 0
    %s11 = scalar_lea.sflag [#allocation7], 1
    %12 = vsyncpa %s11, 0
    %13 = vsyncpa [#allocation5], 0
    %s14 = scalar_lea.sflag [#allocation5], 1
    %15 = vsyncpa %s14, 0
    loop: start=0, step=1, limit=4
    $region2: #{tpu_custom_call.1} parent=1 // loop_pre_header
      _
    $region3: #{tpu_custom_call.1} parent=1 // loop_header
      %s17 = sphi 0, %s21
      %p18 = scmp.ge.s32.totalorder %s17, 4
      %s24 = sphi 0, %s36
      %s25 = sphi 0, %s32
      %s26 = sphi 0, %s24
      %s27 = sphi 0, %s25
      %s28 = sphi 0, %s26
      %s29 = sphi 0, %s27
      %s41 = sphi 0, %s43
      %s44 = sphi 0, %s41
      %s45 = sphi 0, %s44
      %s61 = sphi 0, %s45
      %s69 = sphi 0, %s71
      %s72 = sphi 0, %s69
      %s73 = sphi 0, %s72
      %s89 = sphi 0, %s73
      %s95 = sphi 0, %s97
      %s98 = sphi 0, %s95
      %s99 = sphi 0, %s98
      %s115 = sphi 0, %s99
    $region4: #{tpu_custom_call.1} parent=1 // loop_header_branch
      %20 = sbr.rel (%p18) target = $region8
    $region5: #{tpu_custom_call.1} parent=1 // loop_body
      %s22 = ssub.s32 %s17, 1
      %s23 = ssub.s32 %s17, 2
      %s30 = sadd.s32 1, %s25
      %p31 = scmp.ge.s32.totalorder %s30, 1
      %s32 = scalar_select %p31, 0, %s30
      %s33 = sadd.s32 1, %s24
      %s34 = scalar_select %p31, %s33, %s24
      %p35 = scmp.ge.s32.totalorder %s34, 2
      %s36 = scalar_select %p35, 0, %s34
      %s37 = sadd.s32 %s24, %s25
      %s38 = sadd.s32 %s36, %s32
      %s39 = ssub.s32 %s37, %s38
      %p40 = scmp.eq.s32.totalorder %s39, 0
      %s42 = sadd.s32 %s41, 1
      %s43 = scalar_select %p40, %s41, %s42
      %p46 = pneg %p40
      %p47 = scmp.eq.s32.totalorder %s17, 1
      %p48 = por %p46, %p47
      %p49 = scmp.ne.s32.totalorder %s41, %s44
      %p50 = scmp.eq.s32.totalorder %s17, 0
      %p51 = por %p49, %p50
      %p52 = scmp.ne.s32.totalorder %s41, %s44
      %p53 = scmp.eq.s32.totalorder %s22, 1
      %p54 = por %p52, %p53
      %p55 = scmp.ne.s32.totalorder %s44, %s45
      %p56 = scmp.eq.s32.totalorder %s22, 0
      %p57 = por %p55, %p56
      %p58 = scmp.ne.s32.totalorder %s44, %s45
      %p59 = scmp.eq.s32.totalorder %s23, 1
      %p60 = por %p58, %p59
      %p62 = scmp.ne.s32.totalorder %s45, %s61
      %p63 = scmp.eq.s32.totalorder %s23, 0
      %p64 = por %p62, %p63
      %s65 = sadd.s32 %s24, %s25
      %s66 = sadd.s32 %s36, %s32
      %s67 = ssub.s32 %s65, %s66
      %p68 = scmp.eq.s32.totalorder %s67, 0
      %s70 = sadd.s32 %s69, 1
      %s71 = scalar_select %p68, %s69, %s70
      %p74 = pneg %p68
      %p75 = scmp.eq.s32.totalorder %s17, 1
      %p76 = por %p74, %p75
      %p77 = scmp.ne.s32.totalorder %s69, %s72
      %p78 = scmp.eq.s32.totalorder %s17, 0
      %p79 = por %p77, %p78
      %p80 = scmp.ne.s32.totalorder %s69, %s72
      %p81 = scmp.eq.s32.totalorder %s22, 1
      %p82 = por %p80, %p81
      %p83 = scmp.ne.s32.totalorder %s72, %s73
      %p84 = scmp.eq.s32.totalorder %s22, 0
      %p85 = por %p83, %p84
      %p86 = scmp.ne.s32.totalorder %s72, %s73
      %p87 = scmp.eq.s32.totalorder %s23, 1
      %p88 = por %p86, %p87
      %p90 = scmp.ne.s32.totalorder %s73, %s89
      %p91 = scmp.eq.s32.totalorder %s23, 0
      %p92 = por %p90, %p91
      %s93 = ssub.s32 %s24, %s36
      %p94 = scmp.eq.s32.totalorder %s93, 0
      %s96 = sadd.s32 %s95, 1
      %s97 = scalar_select %p94, %s95, %s96
      %p100 = pneg %p94
      %p101 = scmp.eq.s32.totalorder %s17, 1
      %p102 = por %p100, %p101
      %p103 = scmp.ne.s32.totalorder %s95, %s98
      %p104 = scmp.eq.s32.totalorder %s17, 0
      %p105 = por %p103, %p104
      %p106 = scmp.ne.s32.totalorder %s95, %s98
      %p107 = scmp.eq.s32.totalorder %s22, 1
      %p108 = por %p106, %p107
      %p109 = scmp.ne.s32.totalorder %s98, %s99
      %p110 = scmp.eq.s32.totalorder %s22, 0
      %p111 = por %p109, %p110
      %p112 = scmp.ne.s32.totalorder %s98, %s99
      %p113 = scmp.eq.s32.totalorder %s23, 1
      %p114 = por %p112, %p113
      %p116 = scmp.ne.s32.totalorder %s99, %s115
      %p117 = scmp.eq.s32.totalorder %s23, 0
      %p118 = por %p116, %p117
      %p119 = scmp.le.s32.totalorder 1, %s17
      %p120 = scmp.lt.s32.totalorder %s17, 3
      %p121 = pnand %p119, %p120
      %p122 = pneg %p121
      // Predicated region
      $region9: #{tpu_custom_call.1} parent=5 // pred_check
        _
      $region10: #{tpu_custom_call.1} parent=5 // pred_check_branch
        %124 = sbr.rel (%p121) target = $region12
      $region11: #{tpu_custom_call.1} parent=5 // pred_region
        %s125 = ssub.s32 %s17, 1
      $region12: #{tpu_custom_call.1} parent=5 // pred_fallthru
        _
      %p126 = scmp.lt.s32.totalorder %s17, 2
      // Predicated region
      $region13: #{tpu_custom_call.1} parent=5 // pred_check
        %p127 = pneg %p126
      $region14: #{tpu_custom_call.1} parent=5 // pred_check_branch
        %129 = sbr.rel (%p127) target = $region16
      $region15: #{tpu_custom_call.1} parent=5 // pred_region
        // Predicated region
        $region17: #{tpu_custom_call.1} parent=15 // pred_check
          %p130 = pneg %p51
        $region18: #{tpu_custom_call.1} parent=15 // pred_check_branch
          %132 = sbr.rel (%p130) target = $region20
        $region19: #{tpu_custom_call.1} parent=15 // pred_region
          %s133 = sand.u32 %s41, 1
          %s134 = scalar_lea.sflag [#allocation4], %s133
          %s135 = sand.u32 %s41, 1
          %s136 = smul.addr %s135, 64
          %s137 = scalar_lea.vmem [#allocation3], %s136
          %s138 = sadd.s32 %s24, %s25
          %s139 = smul.u32 4, %s138
          %s141 = ssub.s32 1024, 1024
          %142 = vsyncadd %s134, %s141
          %s143 = smul.addr %s139, 2
          %s144 = smul.addr %s143, 128
          %s145 = scalar_lea.hbm %s0, %s144
          %s146 = sshll.u32 %s137, 4
          %s147 = int_to_ptr.vmem [resolvable:$true] %s146
          %152 = dma.hbm_to_vmem [thread:$0]  %s145, 1024, %s147, %s134, 128, 128, 8
        $region20: #{tpu_custom_call.1} parent=15 // pred_fallthru
          _
        // Predicated region
        $region21: #{tpu_custom_call.1} parent=15 // pred_check
          %p153 = pneg %p79
        $region22: #{tpu_custom_call.1} parent=15 // pred_check_branch
          %155 = sbr.rel (%p153) target = $region24
        $region23: #{tpu_custom_call.1} parent=15 // pred_region
          %s156 = sand.u32 %s69, 1
          %s157 = scalar_lea.sflag [#allocation7], %s156
          %s158 = sand.u32 %s69, 1
          %s159 = smul.addr %s158, 64
          %s160 = scalar_lea.vmem [#allocation6], %s159
          %s161 = sadd.s32 %s24, %s25
          %s162 = smul.u32 4, %s161
          %s164 = ssub.s32 1024, 1024
          %165 = vsyncadd %s157, %s164
          %s166 = smul.addr %s162, 2
          %s167 = smul.addr %s166, 128
          %s168 = scalar_lea.hbm %s1, %s167
          %s169 = sshll.u32 %s160, 4
          %s170 = int_to_ptr.vmem [resolvable:$true] %s169
          %175 = dma.hbm_to_vmem [thread:$0]  %s168, 1024, %s170, %s157, 128, 128, 8
        $region24: #{tpu_custom_call.1} parent=15 // pred_fallthru
          _
      $region16: #{tpu_custom_call.1} parent=5 // pred_fallthru
        _
      %p176 = scmp.le.s32.totalorder 1, %s17
      %p177 = scmp.lt.s32.totalorder %s17, 3
      %p178 = pnand %p176, %p177
      %p179 = pneg %p178
      // Predicated region
      $region25: #{tpu_custom_call.1} parent=5 // pred_check
        _
      $region26: #{tpu_custom_call.1} parent=5 // pred_check_branch
        %181 = sbr.rel (%p178) target = $region28
      $region27: #{tpu_custom_call.1} parent=5 // pred_region
        %s182 = ssub.s32 %s17, 1
        %s183 = sand.u32 %s44, 1
        %s184 = scalar_lea.sflag [#allocation4], %s183
        %s185 = sand.u32 %s44, 1
        %s186 = smul.addr %s185, 64
        %s187 = scalar_lea.vmem [#allocation3], %s186
        // Predicated region
        $region29: #{tpu_custom_call.1} parent=27 // pred_check
          %p188 = pneg %p57
        $region30: #{tpu_custom_call.1} parent=27 // pred_check_branch
          %190 = sbr.rel (%p188) target = $region32
        $region31: #{tpu_custom_call.1} parent=27 // pred_region
          %191 = dma.done %s184, 1024
        $region32: #{tpu_custom_call.1} parent=27 // pred_fallthru
          _
        %s192 = sand.u32 %s72, 1
        %s193 = scalar_lea.sflag [#allocation7], %s192
        %s194 = sand.u32 %s72, 1
        %s195 = smul.addr %s194, 64
        %s196 = scalar_lea.vmem [#allocation6], %s195
        // Predicated region
        $region33: #{tpu_custom_call.1} parent=27 // pred_check
          %p197 = pneg %p85
        $region34: #{tpu_custom_call.1} parent=27 // pred_check_branch
          %199 = sbr.rel (%p197) target = $region36
        $region35: #{tpu_custom_call.1} parent=27 // pred_region
          %200 = dma.done %s193, 1024
        $region36: #{tpu_custom_call.1} parent=27 // pred_fallthru
          _
        %s201 = sand.u32 %s44, 1
        %s202 = scalar_lea.sflag [#allocation4], %s201
        %s203 = sand.u32 %s44, 1
        %s204 = smul.addr %s203, 64
        %s205 = scalar_lea.vmem [#allocation3], %s204
        %p206 = pneg %p57
        %p207 = pneg %p54
        %s208 = sand.u32 %s72, 1
        %s209 = scalar_lea.sflag [#allocation7], %s208
        %s210 = sand.u32 %s72, 1
        %s211 = smul.addr %s210, 64
        %s212 = scalar_lea.vmem [#allocation6], %s211
        %p213 = pneg %p85
        %p214 = pneg %p82
        %p215 = pneg %p111
        %p216 = pneg %p108
        %s217 = sand.u32 %s98, 1
        %s218 = scalar_lea.sflag [#allocation5], %s217
        %s219 = sand.u32 %s98, 1
        %s220 = smul.addr %s219, 16
        %s221 = scalar_lea.vmem [#allocation8], %s220
        %s222 = sadd.s32 %s26, %s27
        %s223 = smul.u32 4, %s222
        %s224 = sadd.s32 %s26, %s27
        %s225 = smul.u32 4, %s224
        %p226 = scmp.eq.s32.totalorder %s27, 0
        // Predicated region
        $region37: #{tpu_custom_call.1} parent=27 // pred_check
          %p227 = pneg %p226
        $region38: #{tpu_custom_call.1} parent=27 // pred_check_branch
          %229 = sbr.rel (%p227) target = $region40
        $region39: #{tpu_custom_call.1} parent=27 // pred_region
          %vm230 = vcmask 146432
          %231 = vst.msk [vmem:[#allocation2] sm:$0xff] %vm230, 0.0
          %232 = vst.msk [vmem:[#allocation2 + $0x8] sm:$0xff] %vm230, 0.0
          %vm233 = vcmask 140288
          %234 = vst.msk [vmem:[#allocation2 + $0x10] sm:$0x3] %vm233, 0.0
          %235 = vst.msk [vmem:[#allocation2 + $0x18] sm:$0xff] %vm230, 0.0
          %236 = vst.msk [vmem:[#allocation2 + $0x20] sm:$0xff] %vm230, 0.0
          %237 = vst.msk [vmem:[#allocation2 + $0x28] sm:$0x3] %vm233, 0.0
          %238 = vst.msk [vmem:[#allocation2 + $0x30] sm:$0xff] %vm230, 0.0
          %239 = vst.msk [vmem:[#allocation2 + $0x38] sm:$0xff] %vm230, 0.0
          %240 = vst.msk [vmem:[#allocation2 + $0x40] sm:$0x3] %vm233, 0.0
          %241 = vst.msk [vmem:[#allocation2 + $0x48] sm:$0xff] %vm230, 0.0
          %242 = vst.msk [vmem:[#allocation2 + $0x50] sm:$0xff] %vm230, 0.0
          %243 = vst.msk [vmem:[#allocation2 + $0x58] sm:$0x3] %vm233, 0.0
          %vm244 = vcmask 130048
          %245 = vst.msk [vmem:[%s221] sm:$0xff] %vm244, 0.0
          %246 = vst.msk [vmem:[%s221 + $0x8] sm:$0xff] %vm244, 0.0
        $region40: #{tpu_custom_call.1} parent=27 // pred_fallthru
          _
        %v247 = vld [vmem:[%s196] sm:$0xff]
        %v248 = vld [vmem:[%s196 + $0x8] sm:$0xff]
        %v249 = vld [vmem:[%s196 + $0x10] sm:$0xff]
        %v250 = vld [vmem:[%s196 + $0x18] sm:$0xff]
        %v251 = vld [vmem:[%s196 + $0x20] sm:$0xff]
        %v252 = vld [vmem:[%s196 + $0x28] sm:$0xff]
        %v253 = vld [vmem:[%s196 + $0x30] sm:$0xff]
        %v254 = vld [vmem:[%s196 + $0x38] sm:$0xff]
        %263 = vrot.lane.b32.xlu0 %v247, 1
        %v264 = vpop.permute.xlu0 %263
        %265 = vrot.lane.b32.xlu0 %v248, 1
        %v266 = vpop.permute.xlu0 %265
        %267 = vrot.lane.b32.xlu0 %v249, 1
        %v268 = vpop.permute.xlu0 %267
        %269 = vrot.lane.b32.xlu0 %v250, 1
        %v270 = vpop.permute.xlu0 %269
        %271 = vrot.lane.b32.xlu0 %v251, 1
        %v272 = vpop.permute.xlu0 %271
        %273 = vrot.lane.b32.xlu0 %v252, 1
        %v274 = vpop.permute.xlu0 %273
        %275 = vrot.lane.b32.xlu0 %v253, 1
        %v276 = vpop.permute.xlu0 %275
        %277 = vrot.lane.b32.xlu0 %v254, 1
        %v278 = vpop.permute.xlu0 %277
        %vm287 = vcmask 138248
        %288 = vst.msk [vmem:[#allocation2 + $0x1] sm:$0xff] %vm287, %v264
        %289 = vst.msk [vmem:[#allocation2 + $0x9] sm:$0xff] %vm287, %v266
        %290 = vst.msk [vmem:[#allocation2 + $0x19] sm:$0xff] %vm287, %v268
        %291 = vst.msk [vmem:[#allocation2 + $0x21] sm:$0xff] %vm287, %v270
        %292 = vst.msk [vmem:[#allocation2 + $0x31] sm:$0xff] %vm287, %v272
        %293 = vst.msk [vmem:[#allocation2 + $0x39] sm:$0xff] %vm287, %v274
        %294 = vst.msk [vmem:[#allocation2 + $0x49] sm:$0xff] %vm287, %v276
        %295 = vst.msk [vmem:[#allocation2 + $0x51] sm:$0xff] %vm287, %v278
        %v296 = vld [vmem:[#allocation2] sm:$0xff]
        %v297 = vld [vmem:[#allocation2 + $0x8] sm:$0xff]
        %v298 = vld [vmem:[#allocation2 + $0x18] sm:$0xff]
        %v299 = vld [vmem:[#allocation2 + $0x20] sm:$0xff]
        %v300 = vld [vmem:[#allocation2 + $0x30] sm:$0xff]
        %v301 = vld [vmem:[#allocation2 + $0x38] sm:$0xff]
        %v302 = vld [vmem:[#allocation2 + $0x48] sm:$0xff]
        %v303 = vld [vmem:[#allocation2 + $0x50] sm:$0xff]
        %v304 = vsub.f32 0.0, %v296
        %v305 = vsub.f32 0.0, %v297
        %v306 = vsub.f32 0.0, %v298
        %v307 = vsub.f32 0.0, %v299
        %v308 = vsub.f32 0.0, %v300
        %v309 = vsub.f32 0.0, %v301
        %v310 = vsub.f32 0.0, %v302
        %v311 = vsub.f32 0.0, %v303
        %v312 = vmul.f32 %v296, -2.0
        %v313 = vmul.f32 %v297, -2.0
        %v314 = vmul.f32 %v298, -2.0
        %v315 = vmul.f32 %v299, -2.0
        %v316 = vmul.f32 %v300, -2.0
        %v317 = vmul.f32 %v301, -2.0
        %v318 = vmul.f32 %v302, -2.0
        %v319 = vmul.f32 %v303, -2.0
        %328 = vrot.lane.b32.xlu0 %v312, 127
        %v329 = vpop.permute.xlu0 %328
        %330 = vrot.lane.b32.xlu0 %v313, 127
        %v331 = vpop.permute.xlu0 %330
        %332 = vrot.lane.b32.xlu0 %v314, 127
        %v333 = vpop.permute.xlu0 %332
        %334 = vrot.lane.b32.xlu0 %v315, 127
        %v335 = vpop.permute.xlu0 %334
        %336 = vrot.lane.b32.xlu0 %v316, 127
        %v337 = vpop.permute.xlu0 %336
        %338 = vrot.lane.b32.xlu0 %v317, 127
        %v339 = vpop.permute.xlu0 %338
        %340 = vrot.lane.b32.xlu0 %v318, 127
        %v341 = vpop.permute.xlu0 %340
        %342 = vrot.lane.b32.xlu0 %v319, 127
        %v343 = vpop.permute.xlu0 %342
        %v352 = vadd.f32 %v304, %v329
        %v353 = vadd.f32 %v305, %v331
        %v354 = vadd.f32 %v306, %v333
        %v355 = vadd.f32 %v307, %v335
        %v356 = vadd.f32 %v308, %v337
        %v357 = vadd.f32 %v309, %v339
        %v358 = vadd.f32 %v310, %v341
        %v359 = vadd.f32 %v311, %v343
        %368 = vrot.lane.b32.xlu0 %v296, 126
        %v369 = vpop.permute.xlu0 %368
        %370 = vrot.lane.b32.xlu0 %v297, 126
        %v371 = vpop.permute.xlu0 %370
        %372 = vrot.lane.b32.xlu0 %v298, 126
        %v373 = vpop.permute.xlu0 %372
        %374 = vrot.lane.b32.xlu0 %v299, 126
        %v375 = vpop.permute.xlu0 %374
        %376 = vrot.lane.b32.xlu0 %v300, 126
        %v377 = vpop.permute.xlu0 %376
        %378 = vrot.lane.b32.xlu0 %v301, 126
        %v379 = vpop.permute.xlu0 %378
        %380 = vrot.lane.b32.xlu0 %v302, 126
        %v381 = vpop.permute.xlu0 %380
        %382 = vrot.lane.b32.xlu0 %v303, 126
        %v383 = vpop.permute.xlu0 %382
        %v392 = vadd.f32 %v304, %v369
        %v393 = vadd.f32 %v305, %v371
        %v394 = vadd.f32 %v306, %v373
        %v395 = vadd.f32 %v307, %v375
        %v396 = vadd.f32 %v308, %v377
        %v397 = vadd.f32 %v309, %v379
        %v398 = vadd.f32 %v310, %v381
        %v399 = vadd.f32 %v311, %v383
        %408 = vrot.lane.b32.xlu0 %v304, 126
        %v409 = vpop.permute.xlu0 %408
        %410 = vrot.lane.b32.xlu0 %v305, 126
        %v411 = vpop.permute.xlu0 %410
        %412 = vrot.lane.b32.xlu0 %v306, 126
        %v413 = vpop.permute.xlu0 %412
        %414 = vrot.lane.b32.xlu0 %v307, 126
        %v415 = vpop.permute.xlu0 %414
        %416 = vrot.lane.b32.xlu0 %v308, 126
        %v417 = vpop.permute.xlu0 %416
        %418 = vrot.lane.b32.xlu0 %v309, 126
        %v419 = vpop.permute.xlu0 %418
        %420 = vrot.lane.b32.xlu0 %v310, 126
        %v421 = vpop.permute.xlu0 %420
        %422 = vrot.lane.b32.xlu0 %v311, 126
        %v423 = vpop.permute.xlu0 %422
        %v432 = vadd.f32 %v352, %v409
        %v433 = vadd.f32 %v353, %v411
        %v434 = vadd.f32 %v354, %v413
        %v435 = vadd.f32 %v355, %v415
        %v436 = vadd.f32 %v356, %v417
        %v437 = vadd.f32 %v357, %v419
        %v438 = vadd.f32 %v358, %v421
        %v439 = vadd.f32 %v359, %v423
        %v440 = vld [vmem:[#allocation2 + $0x1] sm:$0xff]
        %v441 = vld [vmem:[#allocation2 + $0x9] sm:$0xff]
        %v442 = vld [vmem:[#allocation2 + $0x19] sm:$0xff]
        %v443 = vld [vmem:[#allocation2 + $0x21] sm:$0xff]
        %v444 = vld [vmem:[#allocation2 + $0x31] sm:$0xff]
        %v445 = vld [vmem:[#allocation2 + $0x39] sm:$0xff]
        %v446 = vld [vmem:[#allocation2 + $0x49] sm:$0xff]
        %v447 = vld [vmem:[#allocation2 + $0x51] sm:$0xff]
        %v448 = vmul.f32 %v440, -2.0
        %v449 = vmul.f32 %v441, -2.0
        %v450 = vmul.f32 %v442, -2.0
        %v451 = vmul.f32 %v443, -2.0
        %v452 = vmul.f32 %v444, -2.0
        %v453 = vmul.f32 %v445, -2.0
        %v454 = vmul.f32 %v446, -2.0
        %v455 = vmul.f32 %v447, -2.0
        %v456 = vadd.f32 %v392, %v448
        %v457 = vadd.f32 %v393, %v449
        %v458 = vadd.f32 %v394, %v450
        %v459 = vadd.f32 %v395, %v451
        %v460 = vadd.f32 %v396, %v452
        %v461 = vadd.f32 %v397, %v453
        %v462 = vadd.f32 %v398, %v454
        %v463 = vadd.f32 %v399, %v455
        %v464 = vmul.f32 %v440, 2.0
        %v465 = vmul.f32 %v441, 2.0
        %v466 = vmul.f32 %v442, 2.0
        %v467 = vmul.f32 %v443, 2.0
        %v468 = vmul.f32 %v444, 2.0
        %v469 = vmul.f32 %v445, 2.0
        %v470 = vmul.f32 %v446, 2.0
        %v471 = vmul.f32 %v447, 2.0
        %480 = vrot.lane.b32.xlu0 %v464, 126
        %v481 = vpop.permute.xlu0 %480
        %482 = vrot.lane.b32.xlu0 %v465, 126
        %v483 = vpop.permute.xlu0 %482
        %484 = vrot.lane.b32.xlu0 %v466, 126
        %v485 = vpop.permute.xlu0 %484
        %486 = vrot.lane.b32.xlu0 %v467, 126
        %v487 = vpop.permute.xlu0 %486
        %488 = vrot.lane.b32.xlu0 %v468, 126
        %v489 = vpop.permute.xlu0 %488
        %490 = vrot.lane.b32.xlu0 %v469, 126
        %v491 = vpop.permute.xlu0 %490
        %492 = vrot.lane.b32.xlu0 %v470, 126
        %v493 = vpop.permute.xlu0 %492
        %494 = vrot.lane.b32.xlu0 %v471, 126
        %v495 = vpop.permute.xlu0 %494
        %v504 = vadd.f32 %v456, %v481
        %v505 = vadd.f32 %v457, %v483
        %v506 = vadd.f32 %v458, %v485
        %v507 = vadd.f32 %v459, %v487
        %v508 = vadd.f32 %v460, %v489
        %v509 = vadd.f32 %v461, %v491
        %v510 = vadd.f32 %v462, %v493
        %v511 = vadd.f32 %v463, %v495
        %v512 = vld [vmem:[#allocation2 + $0x2] sm:$0xff]
        %v513 = vld [vmem:[#allocation2 + $0xa] sm:$0xff]
        %v514 = vld [vmem:[#allocation2 + $0x1a] sm:$0xff]
        %v515 = vld [vmem:[#allocation2 + $0x22] sm:$0xff]
        %v516 = vld [vmem:[#allocation2 + $0x32] sm:$0xff]
        %v517 = vld [vmem:[#allocation2 + $0x3a] sm:$0xff]
        %v518 = vld [vmem:[#allocation2 + $0x4a] sm:$0xff]
        %v519 = vld [vmem:[#allocation2 + $0x52] sm:$0xff]
        %v520 = vsub.f32 0.0, %v512
        %v521 = vsub.f32 0.0, %v513
        %v522 = vsub.f32 0.0, %v514
        %v523 = vsub.f32 0.0, %v515
        %v524 = vsub.f32 0.0, %v516
        %v525 = vsub.f32 0.0, %v517
        %v526 = vsub.f32 0.0, %v518
        %v527 = vsub.f32 0.0, %v519
        %v528 = vadd.f32 %v504, %v520
        %v529 = vadd.f32 %v505, %v521
        %v530 = vadd.f32 %v506, %v522
        %v531 = vadd.f32 %v507, %v523
        %v532 = vadd.f32 %v508, %v524
        %v533 = vadd.f32 %v509, %v525
        %v534 = vadd.f32 %v510, %v526
        %v535 = vadd.f32 %v511, %v527
        %v536 = vadd.f32 %v432, %v512
        %v537 = vadd.f32 %v433, %v513
        %v538 = vadd.f32 %v434, %v514
        %v539 = vadd.f32 %v435, %v515
        %v540 = vadd.f32 %v436, %v516
        %v541 = vadd.f32 %v437, %v517
        %v542 = vadd.f32 %v438, %v518
        %v543 = vadd.f32 %v439, %v519
        %v544 = vmul.f32 %v512, 2.0
        %v545 = vmul.f32 %v513, 2.0
        %v546 = vmul.f32 %v514, 2.0
        %v547 = vmul.f32 %v515, 2.0
        %v548 = vmul.f32 %v516, 2.0
        %v549 = vmul.f32 %v517, 2.0
        %v550 = vmul.f32 %v518, 2.0
        %v551 = vmul.f32 %v519, 2.0
        %560 = vrot.lane.b32.xlu0 %v544, 127
        %v561 = vpop.permute.xlu0 %560
        %562 = vrot.lane.b32.xlu0 %v545, 127
        %v563 = vpop.permute.xlu0 %562
        %564 = vrot.lane.b32.xlu0 %v546, 127
        %v565 = vpop.permute.xlu0 %564
        %566 = vrot.lane.b32.xlu0 %v547, 127
        %v567 = vpop.permute.xlu0 %566
        %568 = vrot.lane.b32.xlu0 %v548, 127
        %v569 = vpop.permute.xlu0 %568
        %570 = vrot.lane.b32.xlu0 %v549, 127
        %v571 = vpop.permute.xlu0 %570
        %572 = vrot.lane.b32.xlu0 %v550, 127
        %v573 = vpop.permute.xlu0 %572
        %574 = vrot.lane.b32.xlu0 %v551, 127
        %v575 = vpop.permute.xlu0 %574
        %v584 = vadd.f32 %v536, %v561
        %v585 = vadd.f32 %v537, %v563
        %v586 = vadd.f32 %v538, %v565
        %v587 = vadd.f32 %v539, %v567
        %v588 = vadd.f32 %v540, %v569
        %v589 = vadd.f32 %v541, %v571
        %v590 = vadd.f32 %v542, %v573
        %v591 = vadd.f32 %v543, %v575
        %600 = vrot.lane.b32.xlu0 %v512, 126
        %v601 = vpop.permute.xlu0 %600
        %602 = vrot.lane.b32.xlu0 %v513, 126
        %v603 = vpop.permute.xlu0 %602
        %604 = vrot.lane.b32.xlu0 %v514, 126
        %v605 = vpop.permute.xlu0 %604
        %606 = vrot.lane.b32.xlu0 %v515, 126
        %v607 = vpop.permute.xlu0 %606
        %608 = vrot.lane.b32.xlu0 %v516, 126
        %v609 = vpop.permute.xlu0 %608
        %610 = vrot.lane.b32.xlu0 %v517, 126
        %v611 = vpop.permute.xlu0 %610
        %612 = vrot.lane.b32.xlu0 %v518, 126
        %v613 = vpop.permute.xlu0 %612
        %614 = vrot.lane.b32.xlu0 %v519, 126
        %v615 = vpop.permute.xlu0 %614
        %v624 = vadd.f32 %v528, %v601
        %v625 = vadd.f32 %v529, %v603
        %v626 = vadd.f32 %v530, %v605
        %v627 = vadd.f32 %v531, %v607
        %v628 = vadd.f32 %v532, %v609
        %v629 = vadd.f32 %v533, %v611
        %v630 = vadd.f32 %v534, %v613
        %v631 = vadd.f32 %v535, %v615
        %v632 = vadd.f32 %v584, %v601
        %v633 = vadd.f32 %v585, %v603
        %v634 = vadd.f32 %v586, %v605
        %v635 = vadd.f32 %v587, %v607
        %v636 = vadd.f32 %v588, %v609
        %v637 = vadd.f32 %v589, %v611
        %v638 = vadd.f32 %v590, %v613
        %v639 = vadd.f32 %v591, %v615
        %v640 = vmul.f32 %v624, %v624
        %v641 = vmul.f32 %v625, %v625
        %v642 = vmul.f32 %v626, %v626
        %v643 = vmul.f32 %v627, %v627
        %v644 = vmul.f32 %v628, %v628
        %v645 = vmul.f32 %v629, %v629
        %v646 = vmul.f32 %v630, %v630
        %v647 = vmul.f32 %v631, %v631
        %v648 = vmul.f32 %v632, %v632
        %v649 = vmul.f32 %v633, %v633
        %v650 = vmul.f32 %v634, %v634
        %v651 = vmul.f32 %v635, %v635
        %v652 = vmul.f32 %v636, %v636
        %v653 = vmul.f32 %v637, %v637
        %v654 = vmul.f32 %v638, %v638
        %v655 = vmul.f32 %v639, %v639
        %v656 = vadd.f32 %v640, %v648
        %v657 = vadd.f32 %v641, %v649
        %v658 = vadd.f32 %v642, %v650
        %v659 = vadd.f32 %v643, %v651
        %v660 = vadd.f32 %v644, %v652
        %v661 = vadd.f32 %v645, %v653
        %v662 = vadd.f32 %v646, %v654
        %v663 = vadd.f32 %v647, %v655
        %v664 = vrsqrt.pop %v656
        %v665 = vmul.f32 %v656, %v664
        %vm666 = vcmp.eq.f32.partialorder %v656, inf
        %v667 = vsel %vm666, %v656, %v665
        %vm668 = vcmp.eq.f32.partialorder %v656, 0.0
        %v669 = vand.u32 %v656, 2147483648
        %v670 = vsel %vm668, %v669, %v667
        %v671 = vrsqrt.pop %v657
        %v672 = vmul.f32 %v657, %v671
        %vm673 = vcmp.eq.f32.partialorder %v657, inf
        %v674 = vsel %vm673, %v657, %v672
        %vm675 = vcmp.eq.f32.partialorder %v657, 0.0
        %v676 = vand.u32 %v657, 2147483648
        %v677 = vsel %vm675, %v676, %v674
        %v678 = vrsqrt.pop %v658
        %v679 = vmul.f32 %v658, %v678
        %vm680 = vcmp.eq.f32.partialorder %v658, inf
        %v681 = vsel %vm680, %v658, %v679
        %vm682 = vcmp.eq.f32.partialorder %v658, 0.0
        %v683 = vand.u32 %v658, 2147483648
        %v684 = vsel %vm682, %v683, %v681
        %v685 = vrsqrt.pop %v659
        %v686 = vmul.f32 %v659, %v685
        %vm687 = vcmp.eq.f32.partialorder %v659, inf
        %v688 = vsel %vm687, %v659, %v686
        %vm689 = vcmp.eq.f32.partialorder %v659, 0.0
        %v690 = vand.u32 %v659, 2147483648
        %v691 = vsel %vm689, %v690, %v688
        %v692 = vrsqrt.pop %v660
        %v693 = vmul.f32 %v660, %v692
        %vm694 = vcmp.eq.f32.partialorder %v660, inf
        %v695 = vsel %vm694, %v660, %v693
        %vm696 = vcmp.eq.f32.partialorder %v660, 0.0
        %v697 = vand.u32 %v660, 2147483648
        %v698 = vsel %vm696, %v697, %v695
        %v699 = vrsqrt.pop %v661
        %v700 = vmul.f32 %v661, %v699
        %vm701 = vcmp.eq.f32.partialorder %v661, inf
        %v702 = vsel %vm701, %v661, %v700
        %vm703 = vcmp.eq.f32.partialorder %v661, 0.0
        %v704 = vand.u32 %v661, 2147483648
        %v705 = vsel %vm703, %v704, %v702
        %v706 = vrsqrt.pop %v662
        %v707 = vmul.f32 %v662, %v706
        %vm708 = vcmp.eq.f32.partialorder %v662, inf
        %v709 = vsel %vm708, %v662, %v707
        %vm710 = vcmp.eq.f32.partialorder %v662, 0.0
        %v711 = vand.u32 %v662, 2147483648
        %v712 = vsel %vm710, %v711, %v709
        %v713 = vrsqrt.pop %v663
        %v714 = vmul.f32 %v663, %v713
        %vm715 = vcmp.eq.f32.partialorder %v663, inf
        %v716 = vsel %vm715, %v663, %v714
        %vm717 = vcmp.eq.f32.partialorder %v663, 0.0
        %v718 = vand.u32 %v663, 2147483648
        %v719 = vsel %vm717, %v718, %v716
        %v720 = vld [vmem:[%s187] sm:$0xff]
        %v721 = vld [vmem:[%s187 + $0x8] sm:$0xff]
        %v722 = vld [vmem:[%s187 + $0x10] sm:$0xff]
        %v723 = vld [vmem:[%s187 + $0x18] sm:$0xff]
        %v724 = vld [vmem:[%s187 + $0x20] sm:$0xff]
        %v725 = vld [vmem:[%s187 + $0x28] sm:$0xff]
        %v726 = vld [vmem:[%s187 + $0x30] sm:$0xff]
        %v727 = vld [vmem:[%s187 + $0x38] sm:$0xff]
        %v728 = vsub.f32 %v720, %v247
        %v729 = vsub.f32 %v721, %v248
        %v730 = vsub.f32 %v722, %v249
        %v731 = vsub.f32 %v723, %v250
        %v732 = vsub.f32 %v724, %v251
        %v733 = vsub.f32 %v725, %v252
        %v734 = vsub.f32 %v726, %v253
        %v735 = vsub.f32 %v727, %v254
        %v736 = vmul.f32 %v728, %v728
        %v737 = vmul.f32 %v729, %v729
        %v738 = vmul.f32 %v730, %v730
        %v739 = vmul.f32 %v731, %v731
        %v740 = vmul.f32 %v732, %v732
        %v741 = vmul.f32 %v733, %v733
        %v742 = vmul.f32 %v734, %v734
        %v743 = vmul.f32 %v735, %v735
        %v744 = vmul.f32 %v670, %v736
        %v745 = vmul.f32 %v677, %v737
        %v746 = vmul.f32 %v684, %v738
        %v747 = vmul.f32 %v691, %v739
        %v748 = vmul.f32 %v698, %v740
        %v749 = vmul.f32 %v705, %v741
        %v750 = vmul.f32 %v712, %v742
        %v751 = vmul.f32 %v719, %v743
        %v752 = vld [vmem:[%s221] sm:$0xff]
        %v753 = vld [vmem:[%s221 + $0x8] sm:$0xff]
        %vm754 = vcmask 130048
        %v755 = vsel %vm754, %v744, 0.0
        %v756 = vsel %vm754, %v746, 0.0
        %v757 = vadd.f32 %v755, %v756
        %v758 = vsel %vm754, %v748, 0.0
        %v759 = vadd.f32 %v757, %v758
        %v760 = vsel %vm754, %v750, 0.0
        %v761 = vadd.f32 %v759, %v760
        %v762 = vsel %vm754, %v745, 0.0
        %v763 = vsel %vm754, %v747, 0.0
        %v764 = vadd.f32 %v762, %v763
        %v765 = vsel %vm754, %v749, 0.0
        %v766 = vadd.f32 %v764, %v765
        %v767 = vsel %vm754, %v751, 0.0
        %v768 = vadd.f32 %v766, %v767
        %v769 = vadd.f32 %v752, %v761
        %v770 = vadd.f32 %v753, %v768
        %771 = vst.msk [vmem:[%s221] sm:$0xff] %vm754, %v769
        %772 = vst.msk [vmem:[%s221 + $0x8] sm:$0xff] %vm754, %v770
        %s773 = sand.u32 %s98, 1
        %s774 = scalar_lea.sflag [#allocation5], %s773
        %s775 = sand.u32 %s98, 1
        %s776 = smul.addr %s775, 16
        %s777 = scalar_lea.vmem [#allocation8], %s776
        // Predicated region
        $region41: #{tpu_custom_call.1} parent=27 // pred_check
          %p778 = pneg %p108
        $region42: #{tpu_custom_call.1} parent=27 // pred_check_branch
          %780 = sbr.rel (%p778) target = $region44
        $region43: #{tpu_custom_call.1} parent=27 // pred_region
          %s782 = ssub.s32 256, 256
          %783 = vsyncadd %s774, %s782
          %s784 = smul.addr %s26, 2
          %s785 = smul.addr %s784, 128
          %s786 = scalar_lea.hbm %s2, %s785
          %s787 = sshll.u32 %s777, 4
          %s788 = int_to_ptr.vmem [resolvable:$true] %s787
          %793 = dma.vmem_to_hbm [thread:$0]  %s788, 256, %s786, %s774, 128, 128, 8
        $region44: #{tpu_custom_call.1} parent=27 // pred_fallthru
          _
      $region28: #{tpu_custom_call.1} parent=5 // pred_fallthru
        _
      %p794 = scmp.le.s32.totalorder 2, %s17
      // Predicated region
      $region45: #{tpu_custom_call.1} parent=5 // pred_check
        %p795 = pneg %p794
      $region46: #{tpu_custom_call.1} parent=5 // pred_check_branch
        %797 = sbr.rel (%p795) target = $region48
      $region47: #{tpu_custom_call.1} parent=5 // pred_region
        %s798 = ssub.s32 %s17, 2
        // Predicated region
        $region49: #{tpu_custom_call.1} parent=47 // pred_check
          %p799 = pneg %p114
        $region50: #{tpu_custom_call.1} parent=47 // pred_check_branch
          %801 = sbr.rel (%p799) target = $region52
        $region51: #{tpu_custom_call.1} parent=47 // pred_region
          %s802 = sand.u32 %s99, 1
          %s803 = scalar_lea.sflag [#allocation5], %s802
          %s804 = sand.u32 %s99, 1
          %s805 = smul.addr %s804, 16
          %s806 = scalar_lea.vmem [#allocation8], %s805
          %807 = dma.done %s803, 256
        $region52: #{tpu_custom_call.1} parent=47 // pred_fallthru
          _
      $region48: #{tpu_custom_call.1} parent=5 // pred_fallthru
        _
    $region6: #{tpu_custom_call.1} parent=1 // loop_footer
      %s21 = sadd.s32 1, %s17
    $region7: #{tpu_custom_call.1} parent=1 // loop_footer_branch
      %16 = sbr.rel target = $region3
    $region8: #{tpu_custom_call.1} parent=1 // loop_exit
      _
    %808 = vsyncpa [#allocation4], 1
    %s809 = scalar_lea.sflag [#allocation4], 1
    %810 = vsyncpa %s809, 1
    %811 = vsyncpa [#allocation7], 1
    %s812 = scalar_lea.sflag [#allocation7], 1
    %813 = vsyncpa %s812, 1
    %814 = vsyncpa [#allocation5], 1
    %s815 = scalar_lea.sflag [#allocation5], 1
    %816 = vsyncpa %s815, 1

</llo_original>
